<compile_context>
chip_gen: v6e
topology: v6e:2x2x1
jax: 0.10.0
libtpu: 0.0.40
codegen_flags: <defaults>
</compile_context>

<pallas_src>
import functools

import jax
import jax.numpy as jnp
from jax import lax
from jax.experimental import pallas as pl
from jax.experimental.pallas import tpu as pltpu

_SLACK = 2 << 20  # fixed VMEM slack for small temporaries / compiler scratch


# --------------------------------------------------------------------------
# Fused single-pass kernel: pool + shared MLP + gate, one read / one write.
# --------------------------------------------------------------------------
def _fused_kernel(x_ref, w1t_ref, w2t_ref, o_ref, *, inv_hw):
    # x_ref  : (Bt, C, HW)   full ragged HW on the lane axis
    # w1t_ref: (C, Cr)       fc[0] weight, pre-transposed
    # w2t_ref: (Cr, C)       fc[2] weight, pre-transposed
    x = x_ref[...]
    bt = x.shape[0]

    # Adaptive avg/max pool to 1x1 == reductions over the lane (spatial) axis.
    avg = jnp.sum(x, axis=-1, dtype=jnp.float32) * inv_hw          # (Bt, C)
    mx = jnp.max(x, axis=-1).astype(jnp.float32)                   # (Bt, C)

    # Shared MLP; avg- and max-pooled rows stacked -> one pair of matmuls.
    pooled = jnp.concatenate([avg, mx], axis=0)                    # (2Bt, C)
    w1t = w1t_ref[...].astype(jnp.float32)
    w2t = w2t_ref[...].astype(jnp.float32)
    h = jnp.maximum(
        jnp.dot(pooled, w1t, preferred_element_type=jnp.float32,
                precision=lax.Precision.HIGHEST), 0.0)             # (2Bt, Cr)
    out = jnp.dot(h, w2t, preferred_element_type=jnp.float32,
                  precision=lax.Precision.HIGHEST)                 # (2Bt, C)

    scale = jax.nn.sigmoid(out[:bt] + out[bt:])                    # (Bt, C)
    o_ref[...] = (x * scale[:, :, None].astype(x.dtype)).astype(o_ref.dtype)


# --------------------------------------------------------------------------
# Two-pass fallback (single batch row too big for VMEM).
# Pass 1: spatially tiled pooling accumulators + MLP -> (B, C, 1) gate.
# --------------------------------------------------------------------------
def _pool_mlp_kernel(x_ref, w1t_ref, w2t_ref, scale_ref, sum_acc, max_acc,
                     *, hw, thw, inv_hw):
    hwi = pl.program_id(1)
    n_hw = pl.num_programs(1)

    @pl.when(hwi == 0)
    def _():
        sum_acc[...] = jnp.zeros_like(sum_acc)
        max_acc[...] = jnp.full_like(max_acc, -jnp.inf)

    x = x_ref[...]                                       # (1, C, thw)
    if hw % thw != 0:
        # Only the final spatial tile is partial; mask its pad lanes.
        rem = hw - (pl.cdiv(hw, thw) - 1) * thw          # static
        lane = lax.broadcasted_iota(jnp.int32, x.shape, 2)
        limit = jnp.where(hwi == n_hw - 1, rem, thw)
        valid = lane < limit
        xs = jnp.where(valid, x, jnp.zeros((), x.dtype))
        xm = jnp.where(valid, x, jnp.asarray(-jnp.inf, dtype=x.dtype))
    else:
        xs = x
        xm = x

    sum_acc[...] += jnp.sum(xs, axis=-1, dtype=jnp.float32)         # (1, C)
    max_acc[...] = jnp.maximum(max_acc[...],
                               jnp.max(xm, axis=-1).astype(jnp.float32))

    @pl.when(hwi == n_hw - 1)
    def _():
        avg = sum_acc[...] * inv_hw                                  # (1, C)
        pooled = jnp.concatenate([avg, max_acc[...]], axis=0)        # (2, C)
        w1t = w1t_ref[...].astype(jnp.float32)
        w2t = w2t_ref[...].astype(jnp.float32)
        h = jnp.maximum(
            jnp.dot(pooled, w1t, preferred_element_type=jnp.float32,
                    precision=lax.Precision.HIGHEST), 0.0)
        out = jnp.dot(h, w2t, preferred_element_type=jnp.float32,
                      precision=lax.Precision.HIGHEST)               # (2, C)
        scale = jax.nn.sigmoid(out[0:1] + out[1:2])                  # (1, C)
        scale_ref[...] = scale[:, :, None].astype(scale_ref.dtype)   # (1, C, 1)


# Pass 2: freely tiled rescale (pure streaming).
def _rescale_kernel(x_ref, scale_ref, o_ref):
    x = x_ref[...]                                       # (1, C, thw)
    scale = scale_ref[...].astype(x.dtype)               # (1, C, 1)
    o_ref[...] = (x * scale).astype(o_ref.dtype)


# --------------------------------------------------------------------------
# Chip-aware sizing helpers.
# --------------------------------------------------------------------------
def _tpu_info():
    kind = ""
    try:
        kind = (jax.devices()[0].device_kind or "").lower()
    except Exception:
        pass
    dual_core = "v7" in kind
    if "v7" in kind:
        vmem_cap = 64 << 20
    elif any(t in kind for t in ("v4", "v5", "v6")):
        vmem_cap = 128 << 20
    else:
        vmem_cap = 64 << 20          # conservative default for unknown parts
    return dual_core, vmem_cap


def _choose_block_batch(B, per_batch_bytes, weight_bytes, usable, dual_core):
    """Batch-tile size for the fused path; None if even Bt=1 cannot fit."""
    def fits(d):
        # 2x double-buffered input + 2x output + ~1x compute temporaries.
        return 5 * d * per_batch_bytes + weight_bytes + _SLACK <= usable

    divisors = [d for d in range(1, B + 1) if B % d == 0]
    fitting = [d for d in divisors if fits(d)]
    if not fitting:
        return None
    if not dual_core:
        # v5e / v6e: single TensorCore -> biggest block, fewest grid steps.
        return max(fitting)
    # v7x: prefer an even grid with >= 4 steps (>= 2 per core), then >= 2 even.
    for pred in (lambda d: B // d >= 4 and (B // d) % 2 == 0,
                 lambda d: B // d >= 2 and (B // d) % 2 == 0):
        cands = [d for d in fitting if pred(d)]
        if cands:
            return max(cands)
    return max(fitting)


def _lane_tile(C, HW, itemsize, target_bytes):
    """Largest multiple-of-128 spatial tile with C*tile*itemsize <= target."""
    if C * HW * itemsize <= target_bytes:
        return HW                                        # full dim: always legal
    t = max(target_bytes // (C * itemsize * 128), 1) * 128
    return min(t, HW)


# --------------------------------------------------------------------------
# pallas_call wrappers.
# --------------------------------------------------------------------------
def _fused(x_flat, w1t, w2t, *, Bt, HW, usable, weight_bytes):
    B, C, _ = x_flat.shape
    Cr = w1t.shape[1]
    itemsize = jnp.dtype(x_flat.dtype).itemsize
    block_bytes = Bt * C * HW * itemsize
    vmem_limit = int(min(max(5 * block_bytes + weight_bytes + _SLACK, 16 << 20),
                         usable))

    cost = pl.CostEstimate(
        flops=int(3 * B * C * HW + 2 * (2 * B) * C * Cr * 2),
        transcendentals=int(B * C),
        bytes_accessed=int(2 * B * C * HW * itemsize + 2 * weight_bytes))

    kernel = functools.partial(_fused_kernel, inv_hw=1.0 / HW)
    return pl.pallas_call(
        kernel,
        out_shape=jax.ShapeDtypeStruct((B, C, HW), x_flat.dtype),
        grid_spec=pltpu.PrefetchScalarGridSpec(
            num_scalar_prefetch=0,
            grid=(B // Bt,),
            in_specs=[
                pl.BlockSpec((Bt, C, HW), lambda b: (b, 0, 0)),
                pl.BlockSpec((C, Cr), lambda b: (0, 0)),
                pl.BlockSpec((Cr, C), lambda b: (0, 0)),
            ],
            out_specs=pl.BlockSpec((Bt, C, HW), lambda b: (b, 0, 0)),
        ),
        compiler_params=pltpu.CompilerParams(
            dimension_semantics=("parallel",),
            vmem_limit_bytes=vmem_limit),
        cost_estimate=cost,
    )(x_flat, w1t, w2t)


def _two_pass(x_flat, w1t, w2t, *, HW, usable, lane_tile_override=None):
    B, C, _ = x_flat.shape
    Cr = w1t.shape[1]
    itemsize = jnp.dtype(x_flat.dtype).itemsize
    weight_bytes = 2 * C * Cr * 4

    # Pass 1: pooling + MLP -> (B, C, 1) gate.
    thw1 = (min(lane_tile_override, HW) if lane_tile_override
            else _lane_tile(C, HW, itemsize, 2 << 20))
    n_hw1 = pl.cdiv(HW, thw1)
    block1 = C * thw1 * itemsize
    vmem1 = int(min(max(5 * block1 + weight_bytes + _SLACK, 16 << 20), usable))

    pool_kernel = functools.partial(_pool_mlp_kernel, hw=HW, thw=thw1,
                                    inv_hw=1.0 / HW)
    scale = pl.pallas_call(
        pool_kernel,
        out_shape=jax.ShapeDtypeStruct((B, C, 1), jnp.float32),
        grid_spec=pltpu.PrefetchScalarGridSpec(
            num_scalar_prefetch=0,
            grid=(B, n_hw1),
            in_specs=[
                pl.BlockSpec((1, C, thw1), lambda b, h: (b, 0, h)),
                pl.BlockSpec((C, Cr), lambda b, h: (0, 0)),
                pl.BlockSpec((Cr, C), lambda b, h: (0, 0)),
            ],
            out_specs=pl.BlockSpec((1, C, 1), lambda b, h: (b, 0, 0)),
            scratch_shapes=[pltpu.VMEM((1, C), jnp.float32),
                            pltpu.VMEM((1, C), jnp.float32)],
        ),
        compiler_params=pltpu.CompilerParams(
            dimension_semantics=("parallel", "arbitrary"),
            vmem_limit_bytes=vmem1),
    )(x_flat, w1t, w2t)

    # Pass 2: rescale, freely tiled over batch and spatial axes.
    thw2 = (min(lane_tile_override, HW) if lane_tile_override
            else _lane_tile(C, HW, itemsize, 4 << 20))
    n_hw2 = pl.cdiv(HW, thw2)
    block2 = C * thw2 * itemsize
    vmem2 = int(min(max(5 * block2 + _SLACK, 16 << 20), usable))

    return pl.pallas_call(
        _rescale_kernel,
        out_shape=jax.ShapeDtypeStruct((B, C, HW), x_flat.dtype),
        grid_spec=pltpu.PrefetchScalarGridSpec(
            num_scalar_prefetch=0,
            grid=(B, n_hw2),
            in_specs=[
                pl.BlockSpec((1, C, thw2), lambda b, h: (b, 0, h)),
                pl.BlockSpec((1, C, 1), lambda b, h: (b, 0, 0)),
            ],
            out_specs=pl.BlockSpec((1, C, thw2), lambda b, h: (b, 0, h)),
        ),
        compiler_params=pltpu.CompilerParams(
            dimension_semantics=("parallel", "parallel"),
            vmem_limit_bytes=vmem2),
    )(x_flat, scale)


@functools.partial(jax.jit,
                   static_argnames=("force_two_pass", "lane_tile_override"))
def channel_attention(x, w1, w2, *, force_two_pass=False,
                      lane_tile_override=None):
    """CBAM ChannelAttention forward.

    x  : (B, C, H, W)
    w1 : fc[0] Conv2d 1x1 weight, (C//r, C) or (C//r, C, 1, 1), no bias
    w2 : fc[2] Conv2d 1x1 weight, (C, C//r) or (C, C//r, 1, 1), no bias
    """
    B, C, H, W = x.shape
    if w1.ndim == 4:
        w1 = w1.reshape(w1.shape[0], w1.shape[1])
    if w2.ndim == 4:
        w2 = w2.reshape(w2.shape[0], w2.shape[1])
    Cr = w1.shape[0]
    HW = H * W
    itemsize = jnp.dtype(x.dtype).itemsize

    x_flat = x.reshape(B, C, HW)        # metadata-only reshape, no HBM pass
    w1t = w1.T                          # (C, Cr)
    w2t = w2.T                          # (Cr, C)
    weight_bytes = 2 * C * Cr * 4

    dual_core, vmem_cap = _tpu_info()
    usable = vmem_cap - (8 << 20)

    per_batch_bytes = C * HW * itemsize
    Bt = None if force_two_pass else _choose_block_batch(
        B, per_batch_bytes, weight_bytes, usable, dual_core)

    if Bt is None:
        out_flat = _two_pass(x_flat, w1t, w2t, HW=HW, usable=usable,
                             lane_tile_override=lane_tile_override)
    else:
        out_flat = _fused(x_flat, w1t, w2t, Bt=Bt, HW=HW, usable=usable,
                          weight_bytes=weight_bytes)
    return out_flat.reshape(B, C, H, W)


# --------------------------------------------------------------------------
# Reference + tests.
# --------------------------------------------------------------------------
def _reference(x, w1, w2):
    avg = jnp.mean(x, axis=(2, 3))                       # (B, C)
    mx = jnp.max(x, axis=(2, 3))                         # (B, C)

    def fc(v):
        h = jnp.maximum(
            jnp.dot(v, w1.T, precision=lax.Precision.HIGHEST), 0.0)
        return jnp.dot(h, w2.T, precision=lax.Precision.HIGHEST)

    scale = jax.nn.sigmoid(fc(avg) + fc(mx))             # (B, C)
    return x * scale[:, :, None, None]


def _run_case(key, B, C, H, W, reduction, **kw):
    Cr = max(C // reduction, 1)
    kx, k1, k2 = jax.random.split(key, 3)
    x = jax.random.normal(kx, (B, C, H, W), dtype=jnp.float32)
    w1 = jax.random.normal(k1, (Cr, C), dtype=jnp.float32) * (1.0 / jnp.sqrt(C))
    w2 = jax.random.normal(k2, (C, Cr), dtype=jnp.float32) * (1.0 / jnp.sqrt(Cr))

    out = channel_attention(x, w1, w2, **kw)
    jax.block_until_ready(out)

    ref = _reference(x, w1, w2)
    assert out.shape == (B, C, H, W)
    assert jnp.allclose(out, ref, atol=1e-4, rtol=1e-4), \
        f"mismatch B={B} C={C} H={H} W={W} kw={kw}"


if __name__ == "__main__":
    key = jax.random.PRNGKey(0)
    k_a, k_b, k_c = jax.random.split(key, 3)

    # Fused single-pass path, lane-dense HW (B=2, C=32, HW=256, reduction=8).
    _run_case(k_a, B=2, C=32, H=16, W=16, reduction=8)
    # Fused path with ragged HW (HW=49) handled directly — no pad / slice.
    _run_case(k_b, B=4, C=32, H=7, W=7, reduction=8)
    # Two-pass fallback (huge-C*HW path), forced at a small shape with a
    # 128-lane tile so the accumulator and the masked partial spatial tile
    # (HW=300 -> tiles 128,128,44) are exercised.
    _run_case(k_c, B=2, C=32, H=20, W=15, reduction=8,
              force_two_pass=True, lane_tile_override=128)

    print("KERNEL_OK")
</pallas_src>

<mosaic_0001>
module attributes {stable_mosaic.version = 11 : i64} {
  func.func @_fused_kernel(%arg0: i32, %arg1: memref<2x32x256xf32, #tpu.memory_space<vmem>>, %arg2: memref<32x4xf32, #tpu.memory_space<vmem>>, %arg3: memref<4x32xf32, #tpu.memory_space<vmem>>, %arg4: memref<2x32x256xf32, #tpu.memory_space<vmem>>) attributes {dimension_semantics = [#tpu.dimension_semantics<parallel>], iteration_bounds = array<i64: 1>, scalar_prefetch = 0 : i64, scratch_operands = 0 : i64, tpu.core_type = #tpu.core_type<tc>, window_params = [{transform_indices = @transform_0, window_bounds = array<i64: 2, 32, 256>}, {pipeline_mode = #tpu.pipeline_mode<synchronous>, transform_indices = @transform_1, window_bounds = array<i64: 32, 4>}, {pipeline_mode = #tpu.pipeline_mode<synchronous>, transform_indices = @transform_2, window_bounds = array<i64: 4, 32>}, {transform_indices = @transform_3, window_bounds = array<i64: 2, 32, 256>}]} {
    %c0 = arith.constant 0 : index
    %c0_0 = arith.constant 0 : index
    %c0_1 = arith.constant 0 : index
    %0 = vector.load %arg1[%c0, %c0_0, %c0_1] : memref<2x32x256xf32, #tpu.memory_space<vmem>>, vector<2x32x256xf32>
    %cst = arith.constant dense<0.000000e+00> : vector<2x32xf32>
    %1 = vector.multi_reduction <add>, %0, %cst [2] : vector<2x32x256xf32> to vector<2x32xf32>
    %cst_2 = arith.constant 3.906250e-03 : f32
    %2 = vector.broadcast %cst_2 : f32 to vector<2x32xf32>
    %3 = arith.mulf %1, %2 : vector<2x32xf32>
    %cst_3 = arith.constant dense<0xFF800000> : vector<2x32xf32>
    %4 = vector.multi_reduction <maximumf>, %0, %cst_3 [2] : vector<2x32x256xf32> to vector<2x32xf32>
    %5 = tpu.concatenate %3, %4 in 0 : vector<2x32xf32>, vector<2x32xf32> -> vector<4x32xf32>
    %c0_4 = arith.constant 0 : index
    %c0_5 = arith.constant 0 : index
    %6 = vector.load %arg2[%c0_4, %c0_5] : memref<32x4xf32, #tpu.memory_space<vmem>>, vector<32x4xf32>
    %c0_6 = arith.constant 0 : index
    %c0_7 = arith.constant 0 : index
    %7 = vector.load %arg3[%c0_6, %c0_7] : memref<4x32xf32, #tpu.memory_space<vmem>>, vector<4x32xf32>
    %cst_8 = arith.constant dense<0.000000e+00> : vector<4x4xf32>
    %8 = tpu.matmul %5, %6, %cst_8 {dimension_numbers = #tpu.dot_dimension_numbers<[1], [0], [0], [1], [0, 0, 1, 1], [], []>, precision = #tpu.contract_precision<fp32>} : vector<4x32xf32>, vector<32x4xf32>, vector<4x4xf32> -> vector<4x4xf32>
    %cst_9 = arith.constant 0.000000e+00 : f32
    %9 = vector.broadcast %cst_9 : f32 to vector<4x4xf32>
    %10 = arith.maximumf %8, %9 : vector<4x4xf32>
    %cst_10 = arith.constant dense<0.000000e+00> : vector<4x32xf32>
    %11 = tpu.matmul %10, %7, %cst_10 {dimension_numbers = #tpu.dot_dimension_numbers<[1], [0], [0], [1], [0, 0, 1, 1], [], []>, precision = #tpu.contract_precision<fp32>} : vector<4x4xf32>, vector<4x32xf32>, vector<4x32xf32> -> vector<4x32xf32>
    %12 = vector.extract_strided_slice %11 {offsets = [0, 0], sizes = [2, 32], strides = [1, 1]} : vector<4x32xf32> to vector<2x32xf32>
    %13 = vector.extract_strided_slice %11 {offsets = [2, 0], sizes = [2, 32], strides = [1, 1]} : vector<4x32xf32> to vector<2x32xf32>
    %14 = arith.addf %12, %13 : vector<2x32xf32>
    %15 = arith.negf %14 : vector<2x32xf32>
    %16 = math.exp %15 : vector<2x32xf32>
    %cst_11 = arith.constant 1.000000e+00 : f32
    %17 = vector.broadcast %cst_11 : f32 to vector<2x32xf32>
    %18 = arith.addf %17, %16 : vector<2x32xf32>
    %19 = arith.divf %17, %18 : vector<2x32xf32>
    %20 = vector.shape_cast %19 : vector<2x32xf32> to vector<2x32x1xf32>
    %21 = vector.broadcast %20 : vector<2x32x1xf32> to vector<2x32x256xf32>
    %22 = arith.mulf %0, %21 : vector<2x32x256xf32>
    %c0_12 = arith.constant 0 : index
    %c0_13 = arith.constant 0 : index
    %c0_14 = arith.constant 0 : index
    %23 = vector.load %arg4[%c0_12, %c0_13, %c0_14] : memref<2x32x256xf32, #tpu.memory_space<vmem>>, vector<2x32x256xf32>
    tpu.vector_store %arg4[%c0_12, %c0_13, %c0_14], %22 {strides = array<i32>} : memref<2x32x256xf32, #tpu.memory_space<vmem>>, vector<2x32x256xf32>,
    return
  }
  func.func @transform_0(%arg0: i32) -> (i32, i32, i32) {
    %c0_i32 = arith.constant 0 : i32
    %c0_i32_0 = arith.constant 0 : i32
    %c0_i32_1 = arith.constant 0 : i32
    return %arg0, %c0_i32, %c0_i32_0 : i32, i32, i32
  }
  func.func @transform_1(%arg0: i32) -> (i32, i32) {
    %c0_i32 = arith.constant 0 : i32
    %c0_i32_0 = arith.constant 0 : i32
    %c0_i32_1 = arith.constant 0 : i32
    return %c0_i32, %c0_i32_0 : i32, i32
  }
  func.func @transform_2(%arg0: i32) -> (i32, i32) {
    %c0_i32 = arith.constant 0 : i32
    %c0_i32_0 = arith.constant 0 : i32
    %c0_i32_1 = arith.constant 0 : i32
    return %c0_i32, %c0_i32_0 : i32, i32
  }
  func.func @transform_3(%arg0: i32) -> (i32, i32, i32) {
    %c0_i32 = arith.constant 0 : i32
    %c0_i32_0 = arith.constant 0 : i32
    %c0_i32_1 = arith.constant 0 : i32
    return %arg0, %c0_i32, %c0_i32_0 : i32, i32, i32
  }
}

</mosaic_0001>

<llo_original>
// kernel: channel_attention.1
$region0: #{channel_attention.1}
  #allocation0 [shape = 'u32[]', space=smem, size = 0x4, offset = 0x4, fixed_abs, tag = 'smem constant byte address 0x4 - core index']
  #allocation1 [shape = 'u32[144,128]{1,0:T(1,128)}', space=vmem, size = 0x12000, scoped, tag = 'internal scratch']
  %s0 = inlined_call_operand.vmem [shape: f32[2,32,256], index: 0, kind: input, shape index: {}]
  %s1 = inlined_call_operand.vmem [shape: f32[32,4], index: 1, kind: input, shape index: {}]
  %s2 = inlined_call_operand.vmem [shape: f32[4,32], index: 2, kind: input, shape index: {}]
  %s3 = inlined_call_operand.vmem [shape: f32[2,32,256], index: 3, kind: output, shape index: {}]
  %s4 = sld [smem:[#allocation0]]
  $region22: #{channel_attention.1} parent=0
    _
  %s6 = ssub.s32 1, %s4
  %s7 = scalar_select 0, %s6, %s4
  // Predicated region
  $region2: #{channel_attention.1} parent=0 // pred_check
    _
  $region3: #{channel_attention.1} parent=0 // pred_check_branch
    %9 = sbr.rel (0) target = $region5
  $region4: #{channel_attention.1} parent=0 // pred_region
    _
  $region5: #{channel_attention.1} parent=0 // pred_fallthru
    _
  // Predicated region
  $region6: #{channel_attention.1} parent=0 // pred_check
    _
  $region7: #{channel_attention.1} parent=0 // pred_check_branch
    %11 = sbr.rel (0) target = $region9
  $region8: #{channel_attention.1} parent=0 // pred_region
    _
  $region9: #{channel_attention.1} parent=0 // pred_fallthru
    _
  // Predicated region
  $region10: #{channel_attention.1} parent=0 // pred_check
    _
  $region11: #{channel_attention.1} parent=0 // pred_check_branch
    %13 = sbr.rel (0) target = $region13
  $region12: #{channel_attention.1} parent=0 // pred_region
    _
  $region13: #{channel_attention.1} parent=0 // pred_fallthru
    _
  %v14 = vld [vmem:[%s0] sm:$0xff]
  %v15 = vld [vmem:[%s0 + $0x8] sm:$0xff]
  %v16 = vld [vmem:[%s0 + $0x10] sm:$0xff]
  %v17 = vld [vmem:[%s0 + $0x18] sm:$0xff]
  %v18 = vld [vmem:[%s0 + $0x20] sm:$0xff]
  %v19 = vld [vmem:[%s0 + $0x28] sm:$0xff]
  %v20 = vld [vmem:[%s0 + $0x30] sm:$0xff]
  %v21 = vld [vmem:[%s0 + $0x38] sm:$0xff]
  %v22 = vld [vmem:[%s0 + $0x40] sm:$0xff]
  %v23 = vld [vmem:[%s0 + $0x48] sm:$0xff]
  %v24 = vld [vmem:[%s0 + $0x50] sm:$0xff]
  %v25 = vld [vmem:[%s0 + $0x58] sm:$0xff]
  %v26 = vld [vmem:[%s0 + $0x60] sm:$0xff]
  %v27 = vld [vmem:[%s0 + $0x68] sm:$0xff]
  %v28 = vld [vmem:[%s0 + $0x70] sm:$0xff]
  %v29 = vld [vmem:[%s0 + $0x78] sm:$0xff]
  %v30 = vadd.f32 %v14, %v15
  %31 = vadd.xlane.f32.xlu0 %v30
  %v32 = vpop.xlane.xlu0 %31
  %v33 = vadd.f32 %v16, %v17
  %34 = vadd.xlane.f32.xlu0 %v33
  %v35 = vpop.xlane.xlu0 %34
  %v36 = vadd.f32 %v18, %v19
  %37 = vadd.xlane.f32.xlu0 %v36
  %v38 = vpop.xlane.xlu0 %37
  %v39 = vadd.f32 %v20, %v21
  %40 = vadd.xlane.f32.xlu0 %v39
  %v41 = vpop.xlane.xlu0 %40
  %v42 = vadd.f32 %v22, %v23
  %43 = vadd.xlane.f32.xlu0 %v42
  %v44 = vpop.xlane.xlu0 %43
  %v45 = vadd.f32 %v24, %v25
  %46 = vadd.xlane.f32.xlu0 %v45
  %v47 = vpop.xlane.xlu0 %46
  %v48 = vadd.f32 %v26, %v27
  %49 = vadd.xlane.f32.xlu0 %v48
  %v50 = vpop.xlane.xlu0 %49
  %v51 = vadd.f32 %v28, %v29
  %52 = vadd.xlane.f32.xlu0 %v51
  %v53 = vpop.xlane.xlu0 %52
  %v54 = vmul.f32 %v32, 0.00390625
  %v55 = vmul.f32 %v35, 0.00390625
  %v56 = vmul.f32 %v38, 0.00390625
  %v57 = vmul.f32 %v41, 0.00390625
  %v58 = vmul.f32 %v44, 0.00390625
  %v59 = vmul.f32 %v47, 0.00390625
  %v60 = vmul.f32 %v50, 0.00390625
  %v61 = vmul.f32 %v53, 0.00390625
  %v62 = vmax.f32 %v14, %v15
  %63 = vmax.xlane.f32.xlu0 %v62
  %v64 = vpop.xlane.xlu0 %63
  %v65 = vmax.f32 %v16, %v17
  %66 = vmax.xlane.f32.xlu0 %v65
  %v67 = vpop.xlane.xlu0 %66
  %v68 = vmax.f32 %v18, %v19
  %69 = vmax.xlane.f32.xlu0 %v68
  %v70 = vpop.xlane.xlu0 %69
  %v71 = vmax.f32 %v20, %v21
  %72 = vmax.xlane.f32.xlu0 %v71
  %v73 = vpop.xlane.xlu0 %72
  %v74 = vmax.f32 %v22, %v23
  %75 = vmax.xlane.f32.xlu0 %v74
  %v76 = vpop.xlane.xlu0 %75
  %v77 = vmax.f32 %v24, %v25
  %78 = vmax.xlane.f32.xlu0 %v77
  %v79 = vpop.xlane.xlu0 %78
  %v80 = vmax.f32 %v26, %v27
  %81 = vmax.xlane.f32.xlu0 %v80
  %v82 = vpop.xlane.xlu0 %81
  %v83 = vmax.f32 %v28, %v29
  %84 = vmax.xlane.f32.xlu0 %v83
  %v85 = vpop.xlane.xlu0 %84
  %v94 = vlaneseq
  %v95 = vand.u32 %v94, 127
  %v96 = vlaneseq
  %v97 = vshrl.u32 %v96, 7
  %v98 = vsub.s32 %v95, %v97
  %v99 = vrot.slane %v54, %v98
  %v100 = vadd.s32 %v95, 4294967288
  %v101 = vlaneseq
  %v102 = vshrl.u32 %v101, 7
  %v103 = vsub.s32 %v100, %v102
  %v104 = vrot.slane %v55, %v103
  %vm105 = vcmask 130112
  %v106 = vsel %vm105, %v104, %v99
  %v107 = vadd.s32 %v95, 4294967280
  %v108 = vlaneseq
  %v109 = vshrl.u32 %v108, 7
  %v110 = vsub.s32 %v107, %v109
  %v111 = vrot.slane %v56, %v110
  %vm112 = vcmask 195712
  %v113 = vsel %vm112, %v111, %v106
  %v114 = vadd.s32 %v95, 4294967272
  %v115 = vlaneseq
  %v116 = vshrl.u32 %v115, 7
  %v117 = vsub.s32 %v114, %v116
  %v118 = vrot.slane %v57, %v117
  %vm119 = vcmask 261312
  %v120 = vsel %vm119, %v118, %v113
  %v121 = vlaneseq
  %v122 = vshrl.u32 %v121, 7
  %v123 = vsub.s32 %v95, %v122
  %v124 = vrot.slane %v58, %v123
  %v125 = vlaneseq
  %v126 = vshrl.u32 %v125, 7
  %v127 = vsub.s32 %v100, %v126
  %v128 = vrot.slane %v59, %v127
  %v129 = vsel %vm105, %v128, %v124
  %v130 = vlaneseq
  %v131 = vshrl.u32 %v130, 7
  %v132 = vsub.s32 %v107, %v131
  %v133 = vrot.slane %v60, %v132
  %v134 = vsel %vm112, %v133, %v129
  %v135 = vlaneseq
  %v136 = vshrl.u32 %v135, 7
  %v137 = vsub.s32 %v114, %v136
  %v138 = vrot.slane %v61, %v137
  %v139 = vsel %vm119, %v138, %v134
  %vm140 = vcmask 1041409
  %v141 = vsel %vm140, %v139, %v120
  %v151 = vlaneseq
  %v152 = vshrl.u32 %v151, 7
  %v153 = vsub.s32 %v95, %v152
  %v154 = vrot.slane %v64, %v153
  %v155 = vlaneseq
  %v156 = vshrl.u32 %v155, 7
  %v157 = vsub.s32 %v100, %v156
  %v158 = vrot.slane %v67, %v157
  %v159 = vsel %vm105, %v158, %v154
  %v160 = vlaneseq
  %v161 = vshrl.u32 %v160, 7
  %v162 = vsub.s32 %v107, %v161
  %v163 = vrot.slane %v70, %v162
  %v164 = vsel %vm112, %v163, %v159
  %v165 = vlaneseq
  %v166 = vshrl.u32 %v165, 7
  %v167 = vsub.s32 %v114, %v166
  %v168 = vrot.slane %v73, %v167
  %v169 = vsel %vm119, %v168, %v164
  %v170 = vlaneseq
  %v171 = vshrl.u32 %v170, 7
  %v172 = vsub.s32 %v95, %v171
  %v173 = vrot.slane %v76, %v172
  %v174 = vlaneseq
  %v175 = vshrl.u32 %v174, 7
  %v176 = vsub.s32 %v100, %v175
  %v177 = vrot.slane %v79, %v176
  %v178 = vsel %vm105, %v177, %v173
  %v179 = vlaneseq
  %v180 = vshrl.u32 %v179, 7
  %v181 = vsub.s32 %v107, %v180
  %v182 = vrot.slane %v82, %v181
  %v183 = vsel %vm112, %v182, %v178
  %v184 = vlaneseq
  %v185 = vshrl.u32 %v184, 7
  %v186 = vsub.s32 %v114, %v185
  %v187 = vrot.slane %v85, %v186
  %v188 = vsel %vm119, %v187, %v183
  %vm189 = vcmask 1043459
  %v190 = vsel %vm189, %v188, %v169
  %vm192 = vcmask 1041408
  %v193 = vsel %vm192, %v141, %v190
  %v194 = vld [vmem:[%s1] sm:$0xff]
  %v195 = vld [vmem:[%s1 + $0x8] sm:$0xff]
  %v196 = vld [vmem:[%s1 + $0x10] sm:$0xff]
  %v197 = vld [vmem:[%s1 + $0x18] sm:$0xff]
  %v198 = vld [vmem:[%s2] sm:$0xf]
  %vm199 = vcmask 261120
  %v201 = vsel %vm199, %v193, 0
  %203 = vmatprep.subr.mxu0 0.0
  %204 = vmatpush1.msra.mxu0 0.0
  %205 = vmatprep.subr.mxu0 0.0
  %206 = vmatpush1.msra.mxu0 0.0
  %207 = vmatprep.subr.mxu0 0.0
  %208 = vmatpush1.msra.mxu0 0.0
  %209 = vmatprep.subr.mxu0 0.0
  %210 = vmatpush1.msra.mxu0 0.0
  %211 = vmatprep.subr.mxu0 0.0
  %212 = vmatpush1.msra.mxu0 0.0
  %213 = vmatprep.subr.mxu0 0.0
  %214 = vmatpush1.msra.mxu0 0.0
  %215 = vmatprep.subr.mxu0 0.0
  %216 = vmatpush1.msra.mxu0 0.0
  %217 = vmatprep.subr.mxu0 0.0
  %218 = vmatpush1.msra.mxu0 0.0
  %219 = vmatprep.subr.mxu0 0.0
  %220 = vmatpush1.msra.mxu0 0.0
  %221 = vmatprep.subr.mxu0 0.0
  %222 = vmatpush1.msra.mxu0 0.0
  %223 = vmatprep.subr.mxu0 0.0
  %224 = vmatpush1.msra.mxu0 0.0
  %225 = vmatprep.subr.mxu0 0.0
  %226 = vmatpush1.msra.mxu0 0.0
  %227 = vmatprep.subr.mxu0 0.0
  %v228 = vand.u32 %v197, 4294901760
  %229 = vmatpush1.msra.mxu0 %v228
  %230 = vmatprep.subr.mxu0 0.0
  %v231 = vand.u32 %v196, 4294901760
  %232 = vmatpush1.msra.mxu0 %v231
  %233 = vmatprep.subr.mxu0 0.0
  %v234 = vand.u32 %v195, 4294901760
  %235 = vmatpush1.msra.mxu0 %v234
  %236 = vmatprep.subr.mxu0 0.0
  %v237 = vand.u32 %v194, 4294901760
  %238 = vmatpush1.msra.mxu0 %v237
  %239 = vmatprep.subr.mxu0 0.0
  %240 = vmatpush2.msra.mxu0 0.0
  %241 = vmatprep.subr.mxu0 0.0
  %242 = vmatpush2.msra.mxu0 0.0
  %243 = vmatprep.subr.mxu0 0.0
  %244 = vmatpush2.msra.mxu0 0.0
  %245 = vmatprep.subr.mxu0 0.0
  %246 = vmatpush2.msra.mxu0 0.0
  %247 = vmatprep.subr.mxu0 0.0
  %248 = vmatpush2.msra.mxu0 0.0
  %249 = vmatprep.subr.mxu0 0.0
  %250 = vmatpush2.msra.mxu0 0.0
  %251 = vmatprep.subr.mxu0 0.0
  %252 = vmatpush2.msra.mxu0 0.0
  %253 = vmatprep.subr.mxu0 0.0
  %254 = vmatpush2.msra.mxu0 0.0
  %255 = vmatprep.subr.mxu0 0.0
  %256 = vmatpush2.msra.mxu0 0.0
  %257 = vmatprep.subr.mxu0 0.0
  %258 = vmatpush2.msra.mxu0 0.0
  %259 = vmatprep.subr.mxu0 0.0
  %260 = vmatpush2.msra.mxu0 0.0
  %261 = vmatprep.subr.mxu0 0.0
  %262 = vmatpush2.msra.mxu0 0.0
  %263 = vmatprep.subr.mxu0 0.0
  %264 = vmatpush2.msra.mxu0 0.0
  %265 = vmatprep.subr.mxu0 0.0
  %266 = vmatpush2.msra.mxu0 0.0
  %267 = vmatprep.subr.mxu0 0.0
  %268 = vmatpush2.msra.mxu0 0.0
  %269 = vmatprep.subr.mxu0 0.0
  %270 = vmatpush2.msra.mxu0 0.0
  %271 = vmatprep.mubr.f32.mxu0 0.0
  %v272 = vand.u32 %v201, 4294901760
  %v273 = vsub.f32 %v201, %v272
  %v274 = vand.u32 %v273, 4294901760
  %v275 = vsub.f32 %v273, %v274
  %v276 = vand.u32 %v275, 4294901760
  %277 = vmatmul.mubr.f32.gmra.mxu0 %v276
  %v278 = vpop.f32.mrf.mxu0
  %v279 = vadd.f32 0.0, %v278
  %v280 = vpop.f32.mrf.mxu0
  %281 = vdwg.mxu0
  %282 = vmatprep.subr.mxu0 0.0
  %283 = vmatpush1.msra.mxu0 0.0
  %284 = vmatprep.subr.mxu0 0.0
  %285 = vmatpush1.msra.mxu0 0.0
  %286 = vmatprep.subr.mxu0 0.0
  %287 = vmatpush1.msra.mxu0 0.0
  %288 = vmatprep.subr.mxu0 0.0
  %289 = vmatpush1.msra.mxu0 0.0
  %290 = vmatprep.subr.mxu0 0.0
  %291 = vmatpush1.msra.mxu0 0.0
  %292 = vmatprep.subr.mxu0 0.0
  %293 = vmatpush1.msra.mxu0 0.0
  %294 = vmatprep.subr.mxu0 0.0
  %295 = vmatpush1.msra.mxu0 0.0
  %296 = vmatprep.subr.mxu0 0.0
  %297 = vmatpush1.msra.mxu0 0.0
  %298 = vmatprep.subr.mxu0 0.0
  %299 = vmatpush1.msra.mxu0 0.0
  %300 = vmatprep.subr.mxu0 0.0
  %301 = vmatpush1.msra.mxu0 0.0
  %302 = vmatprep.subr.mxu0 0.0
  %303 = vmatpush1.msra.mxu0 0.0
  %304 = vmatprep.subr.mxu0 0.0
  %305 = vmatpush1.msra.mxu0 0.0
  %306 = vmatprep.subr.mxu0 0.0
  %v307 = vand.u32 %v197, 4294901760
  %v308 = vsub.f32 %v197, %v307
  %v309 = vand.u32 %v308, 4294901760
  %v310 = vsub.f32 %v308, %v309
  %v311 = vand.u32 %v310, 4294901760
  %312 = vmatpush1.msra.mxu0 %v311
  %313 = vmatprep.subr.mxu0 0.0
  %v314 = vand.u32 %v196, 4294901760
  %v315 = vsub.f32 %v196, %v314
  %v316 = vand.u32 %v315, 4294901760
  %v317 = vsub.f32 %v315, %v316
  %v318 = vand.u32 %v317, 4294901760
  %319 = vmatpush1.msra.mxu0 %v318
  %320 = vmatprep.subr.mxu0 0.0
  %v321 = vand.u32 %v195, 4294901760
  %v322 = vsub.f32 %v195, %v321
  %v323 = vand.u32 %v322, 4294901760
  %v324 = vsub.f32 %v322, %v323
  %v325 = vand.u32 %v324, 4294901760
  %326 = vmatpush1.msra.mxu0 %v325
  %327 = vmatprep.subr.mxu0 0.0
  %v328 = vand.u32 %v194, 4294901760
  %v329 = vsub.f32 %v194, %v328
  %v330 = vand.u32 %v329, 4294901760
  %v331 = vsub.f32 %v329, %v330
  %v332 = vand.u32 %v331, 4294901760
  %333 = vmatpush1.msra.mxu0 %v332
  %334 = vmatprep.subr.mxu0 0.0
  %335 = vmatpush2.msra.mxu0 0.0
  %336 = vmatprep.subr.mxu0 0.0
  %337 = vmatpush2.msra.mxu0 0.0
  %338 = vmatprep.subr.mxu0 0.0
  %339 = vmatpush2.msra.mxu0 0.0
  %340 = vmatprep.subr.mxu0 0.0
  %341 = vmatpush2.msra.mxu0 0.0
  %342 = vmatprep.subr.mxu0 0.0
  %343 = vmatpush2.msra.mxu0 0.0
  %344 = vmatprep.subr.mxu0 0.0
  %345 = vmatpush2.msra.mxu0 0.0
  %346 = vmatprep.subr.mxu0 0.0
  %347 = vmatpush2.msra.mxu0 0.0
  %348 = vmatprep.subr.mxu0 0.0
  %349 = vmatpush2.msra.mxu0 0.0
  %350 = vmatprep.subr.mxu0 0.0
  %351 = vmatpush2.msra.mxu0 0.0
  %352 = vmatprep.subr.mxu0 0.0
  %353 = vmatpush2.msra.mxu0 0.0
  %354 = vmatprep.subr.mxu0 0.0
  %355 = vmatpush2.msra.mxu0 0.0
  %356 = vmatprep.subr.mxu0 0.0
  %357 = vmatpush2.msra.mxu0 0.0
  %358 = vmatprep.subr.mxu0 0.0
  %359 = vmatpush2.msra.mxu0 0.0
  %360 = vmatprep.subr.mxu0 0.0
  %361 = vmatpush2.msra.mxu0 0.0
  %362 = vmatprep.subr.mxu0 0.0
  %363 = vmatpush2.msra.mxu0 0.0
  %364 = vmatprep.subr.mxu0 0.0
  %365 = vmatpush2.msra.mxu0 0.0
  %366 = vmatprep.mubr.f32.mxu0 0.0
  %v367 = vand.u32 %v201, 4294901760
  %368 = vmatmul.mubr.f32.gmra.mxu0 %v367
  %v369 = vpop.f32.mrf.mxu0
  %v370 = vadd.f32 %v279, %v369
  %v371 = vpop.f32.mrf.mxu0
  %372 = vdwg.mxu0
  %373 = vmatprep.subr.mxu0 0.0
  %374 = vmatpush1.msra.mxu0 0.0
  %375 = vmatprep.subr.mxu0 0.0
  %376 = vmatpush1.msra.mxu0 0.0
  %377 = vmatprep.subr.mxu0 0.0
  %378 = vmatpush1.msra.mxu0 0.0
  %379 = vmatprep.subr.mxu0 0.0
  %380 = vmatpush1.msra.mxu0 0.0
  %381 = vmatprep.subr.mxu0 0.0
  %382 = vmatpush1.msra.mxu0 0.0
  %383 = vmatprep.subr.mxu0 0.0
  %384 = vmatpush1.msra.mxu0 0.0
  %385 = vmatprep.subr.mxu0 0.0
  %386 = vmatpush1.msra.mxu0 0.0
  %387 = vmatprep.subr.mxu0 0.0
  %388 = vmatpush1.msra.mxu0 0.0
  %389 = vmatprep.subr.mxu0 0.0
  %390 = vmatpush1.msra.mxu0 0.0
  %391 = vmatprep.subr.mxu0 0.0
  %392 = vmatpush1.msra.mxu0 0.0
  %393 = vmatprep.subr.mxu0 0.0
  %394 = vmatpush1.msra.mxu0 0.0
  %395 = vmatprep.subr.mxu0 0.0
  %396 = vmatpush1.msra.mxu0 0.0
  %397 = vmatprep.subr.mxu0 0.0
  %v398 = vand.u32 %v197, 4294901760
  %v399 = vsub.f32 %v197, %v398
  %400 = vmatpush1.msra.mxu0 %v399
  %401 = vmatprep.subr.mxu0 0.0
  %v402 = vand.u32 %v196, 4294901760
  %v403 = vsub.f32 %v196, %v402
  %404 = vmatpush1.msra.mxu0 %v403
  %405 = vmatprep.subr.mxu0 0.0
  %v406 = vand.u32 %v195, 4294901760
  %v407 = vsub.f32 %v195, %v406
  %408 = vmatpush1.msra.mxu0 %v407
  %409 = vmatprep.subr.mxu0 0.0
  %v410 = vand.u32 %v194, 4294901760
  %v411 = vsub.f32 %v194, %v410
  %412 = vmatpush1.msra.mxu0 %v411
  %413 = vmatprep.subr.mxu0 0.0
  %414 = vmatpush2.msra.mxu0 0.0
  %415 = vmatprep.subr.mxu0 0.0
  %416 = vmatpush2.msra.mxu0 0.0
  %417 = vmatprep.subr.mxu0 0.0
  %418 = vmatpush2.msra.mxu0 0.0
  %419 = vmatprep.subr.mxu0 0.0
  %420 = vmatpush2.msra.mxu0 0.0
  %421 = vmatprep.subr.mxu0 0.0
  %422 = vmatpush2.msra.mxu0 0.0
  %423 = vmatprep.subr.mxu0 0.0
  %424 = vmatpush2.msra.mxu0 0.0
  %425 = vmatprep.subr.mxu0 0.0
  %426 = vmatpush2.msra.mxu0 0.0
  %427 = vmatprep.subr.mxu0 0.0
  %428 = vmatpush2.msra.mxu0 0.0
  %429 = vmatprep.subr.mxu0 0.0
  %430 = vmatpush2.msra.mxu0 0.0
  %431 = vmatprep.subr.mxu0 0.0
  %432 = vmatpush2.msra.mxu0 0.0
  %433 = vmatprep.subr.mxu0 0.0
  %434 = vmatpush2.msra.mxu0 0.0
  %435 = vmatprep.subr.mxu0 0.0
  %436 = vmatpush2.msra.mxu0 0.0
  %437 = vmatprep.subr.mxu0 0.0
  %438 = vmatpush2.msra.mxu0 0.0
  %439 = vmatprep.subr.mxu0 0.0
  %440 = vmatpush2.msra.mxu0 0.0
  %441 = vmatprep.subr.mxu0 0.0
  %442 = vmatpush2.msra.mxu0 0.0
  %443 = vmatprep.subr.mxu0 0.0
  %444 = vmatpush2.msra.mxu0 0.0
  %445 = vmatprep.mubr.f32.mxu0 0.0
  %v446 = vand.u32 %v201, 4294901760
  %v447 = vsub.f32 %v201, %v446
  %448 = vmatmul.mubr.f32.gmra.mxu0 %v447
  %v449 = vpop.f32.mrf.mxu0
  %v450 = vadd.f32 %v370, %v449
  %v451 = vpop.f32.mrf.mxu0
  %452 = vdwg.mxu0
  %453 = vmatprep.subr.mxu0 0.0
  %454 = vmatpush1.msra.mxu0 0.0
  %455 = vmatprep.subr.mxu0 0.0
  %456 = vmatpush1.msra.mxu0 0.0
  %457 = vmatprep.subr.mxu0 0.0
  %458 = vmatpush1.msra.mxu0 0.0
  %459 = vmatprep.subr.mxu0 0.0
  %460 = vmatpush1.msra.mxu0 0.0
  %461 = vmatprep.subr.mxu0 0.0
  %462 = vmatpush1.msra.mxu0 0.0
  %463 = vmatprep.subr.mxu0 0.0
  %464 = vmatpush1.msra.mxu0 0.0
  %465 = vmatprep.subr.mxu0 0.0
  %466 = vmatpush1.msra.mxu0 0.0
  %467 = vmatprep.subr.mxu0 0.0
  %468 = vmatpush1.msra.mxu0 0.0
  %469 = vmatprep.subr.mxu0 0.0
  %470 = vmatpush1.msra.mxu0 0.0
  %471 = vmatprep.subr.mxu0 0.0
  %472 = vmatpush1.msra.mxu0 0.0
  %473 = vmatprep.subr.mxu0 0.0
  %474 = vmatpush1.msra.mxu0 0.0
  %475 = vmatprep.subr.mxu0 0.0
  %476 = vmatpush1.msra.mxu0 0.0
  %477 = vmatprep.subr.mxu0 0.0
  %v478 = vand.u32 %v197, 4294901760
  %479 = vmatpush1.msra.mxu0 %v478
  %480 = vmatprep.subr.mxu0 0.0
  %v481 = vand.u32 %v196, 4294901760
  %482 = vmatpush1.msra.mxu0 %v481
  %483 = vmatprep.subr.mxu0 0.0
  %v484 = vand.u32 %v195, 4294901760
  %485 = vmatpush1.msra.mxu0 %v484
  %486 = vmatprep.subr.mxu0 0.0
  %v487 = vand.u32 %v194, 4294901760
  %488 = vmatpush1.msra.mxu0 %v487
  %489 = vmatprep.subr.mxu0 0.0
  %490 = vmatpush2.msra.mxu0 0.0
  %491 = vmatprep.subr.mxu0 0.0
  %492 = vmatpush2.msra.mxu0 0.0
  %493 = vmatprep.subr.mxu0 0.0
  %494 = vmatpush2.msra.mxu0 0.0
  %495 = vmatprep.subr.mxu0 0.0
  %496 = vmatpush2.msra.mxu0 0.0
  %497 = vmatprep.subr.mxu0 0.0
  %498 = vmatpush2.msra.mxu0 0.0
  %499 = vmatprep.subr.mxu0 0.0
  %500 = vmatpush2.msra.mxu0 0.0
  %501 = vmatprep.subr.mxu0 0.0
  %502 = vmatpush2.msra.mxu0 0.0
  %503 = vmatprep.subr.mxu0 0.0
  %504 = vmatpush2.msra.mxu0 0.0
  %505 = vmatprep.subr.mxu0 0.0
  %506 = vmatpush2.msra.mxu0 0.0
  %507 = vmatprep.subr.mxu0 0.0
  %508 = vmatpush2.msra.mxu0 0.0
  %509 = vmatprep.subr.mxu0 0.0
  %510 = vmatpush2.msra.mxu0 0.0
  %511 = vmatprep.subr.mxu0 0.0
  %512 = vmatpush2.msra.mxu0 0.0
  %513 = vmatprep.subr.mxu0 0.0
  %514 = vmatpush2.msra.mxu0 0.0
  %515 = vmatprep.subr.mxu0 0.0
  %516 = vmatpush2.msra.mxu0 0.0
  %517 = vmatprep.subr.mxu0 0.0
  %518 = vmatpush2.msra.mxu0 0.0
  %519 = vmatprep.subr.mxu0 0.0
  %520 = vmatpush2.msra.mxu0 0.0
  %521 = vmatprep.mubr.f32.mxu0 0.0
  %v522 = vand.u32 %v201, 4294901760
  %v523 = vsub.f32 %v201, %v522
  %v524 = vand.u32 %v523, 4294901760
  %525 = vmatmul.mubr.f32.gmra.mxu0 %v524
  %v526 = vpop.f32.mrf.mxu0
  %v527 = vadd.f32 %v450, %v526
  %v528 = vpop.f32.mrf.mxu0
  %529 = vdwg.mxu0
  %530 = vmatprep.subr.mxu0 0.0
  %531 = vmatpush1.msra.mxu0 0.0
  %532 = vmatprep.subr.mxu0 0.0
  %533 = vmatpush1.msra.mxu0 0.0
  %534 = vmatprep.subr.mxu0 0.0
  %535 = vmatpush1.msra.mxu0 0.0
  %536 = vmatprep.subr.mxu0 0.0
  %537 = vmatpush1.msra.mxu0 0.0
  %538 = vmatprep.subr.mxu0 0.0
  %539 = vmatpush1.msra.mxu0 0.0
  %540 = vmatprep.subr.mxu0 0.0
  %541 = vmatpush1.msra.mxu0 0.0
  %542 = vmatprep.subr.mxu0 0.0
  %543 = vmatpush1.msra.mxu0 0.0
  %544 = vmatprep.subr.mxu0 0.0
  %545 = vmatpush1.msra.mxu0 0.0
  %546 = vmatprep.subr.mxu0 0.0
  %547 = vmatpush1.msra.mxu0 0.0
  %548 = vmatprep.subr.mxu0 0.0
  %549 = vmatpush1.msra.mxu0 0.0
  %550 = vmatprep.subr.mxu0 0.0
  %551 = vmatpush1.msra.mxu0 0.0
  %552 = vmatprep.subr.mxu0 0.0
  %553 = vmatpush1.msra.mxu0 0.0
  %554 = vmatprep.subr.mxu0 0.0
  %v555 = vand.u32 %v197, 4294901760
  %v556 = vsub.f32 %v197, %v555
  %v557 = vand.u32 %v556, 4294901760
  %558 = vmatpush1.msra.mxu0 %v557
  %559 = vmatprep.subr.mxu0 0.0
  %v560 = vand.u32 %v196, 4294901760
  %v561 = vsub.f32 %v196, %v560
  %v562 = vand.u32 %v561, 4294901760
  %563 = vmatpush1.msra.mxu0 %v562
  %564 = vmatprep.subr.mxu0 0.0
  %v565 = vand.u32 %v195, 4294901760
  %v566 = vsub.f32 %v195, %v565
  %v567 = vand.u32 %v566, 4294901760
  %568 = vmatpush1.msra.mxu0 %v567
  %569 = vmatprep.subr.mxu0 0.0
  %v570 = vand.u32 %v194, 4294901760
  %v571 = vsub.f32 %v194, %v570
  %v572 = vand.u32 %v571, 4294901760
  %573 = vmatpush1.msra.mxu0 %v572
  %574 = vmatprep.subr.mxu0 0.0
  %575 = vmatpush2.msra.mxu0 0.0
  %576 = vmatprep.subr.mxu0 0.0
  %577 = vmatpush2.msra.mxu0 0.0
  %578 = vmatprep.subr.mxu0 0.0
  %579 = vmatpush2.msra.mxu0 0.0
  %580 = vmatprep.subr.mxu0 0.0
  %581 = vmatpush2.msra.mxu0 0.0
  %582 = vmatprep.subr.mxu0 0.0
  %583 = vmatpush2.msra.mxu0 0.0
  %584 = vmatprep.subr.mxu0 0.0
  %585 = vmatpush2.msra.mxu0 0.0
  %586 = vmatprep.subr.mxu0 0.0
  %587 = vmatpush2.msra.mxu0 0.0
  %588 = vmatprep.subr.mxu0 0.0
  %589 = vmatpush2.msra.mxu0 0.0
  %590 = vmatprep.subr.mxu0 0.0
  %591 = vmatpush2.msra.mxu0 0.0
  %592 = vmatprep.subr.mxu0 0.0
  %593 = vmatpush2.msra.mxu0 0.0
  %594 = vmatprep.subr.mxu0 0.0
  %595 = vmatpush2.msra.mxu0 0.0
  %596 = vmatprep.subr.mxu0 0.0
  %597 = vmatpush2.msra.mxu0 0.0
  %598 = vmatprep.subr.mxu0 0.0
  %599 = vmatpush2.msra.mxu0 0.0
  %600 = vmatprep.subr.mxu0 0.0
  %601 = vmatpush2.msra.mxu0 0.0
  %602 = vmatprep.subr.mxu0 0.0
  %603 = vmatpush2.msra.mxu0 0.0
  %604 = vmatprep.subr.mxu0 0.0
  %605 = vmatpush2.msra.mxu0 0.0
  %606 = vmatprep.mubr.f32.mxu0 0.0
  %v607 = vand.u32 %v201, 4294901760
  %608 = vmatmul.mubr.f32.gmra.mxu0 %v607
  %v609 = vpop.f32.mrf.mxu0
  %v610 = vadd.f32 %v527, %v609
  %v611 = vpop.f32.mrf.mxu0
  %612 = vdwg.mxu0
  %613 = vmatprep.subr.mxu0 0.0
  %614 = vmatpush1.msra.mxu0 0.0
  %615 = vmatprep.subr.mxu0 0.0
  %616 = vmatpush1.msra.mxu0 0.0
  %617 = vmatprep.subr.mxu0 0.0
  %618 = vmatpush1.msra.mxu0 0.0
  %619 = vmatprep.subr.mxu0 0.0
  %620 = vmatpush1.msra.mxu0 0.0
  %621 = vmatprep.subr.mxu0 0.0
  %622 = vmatpush1.msra.mxu0 0.0
  %623 = vmatprep.subr.mxu0 0.0
  %624 = vmatpush1.msra.mxu0 0.0
  %625 = vmatprep.subr.mxu0 0.0
  %626 = vmatpush1.msra.mxu0 0.0
  %627 = vmatprep.subr.mxu0 0.0
  %628 = vmatpush1.msra.mxu0 0.0
  %629 = vmatprep.subr.mxu0 0.0
  %630 = vmatpush1.msra.mxu0 0.0
  %631 = vmatprep.subr.mxu0 0.0
  %632 = vmatpush1.msra.mxu0 0.0
  %633 = vmatprep.subr.mxu0 0.0
  %634 = vmatpush1.msra.mxu0 0.0
  %635 = vmatprep.subr.mxu0 0.0
  %636 = vmatpush1.msra.mxu0 0.0
  %637 = vmatprep.subr.mxu0 0.0
  %v638 = vand.u32 %v197, 4294901760
  %639 = vmatpush1.msra.mxu0 %v638
  %640 = vmatprep.subr.mxu0 0.0
  %v641 = vand.u32 %v196, 4294901760
  %642 = vmatpush1.msra.mxu0 %v641
  %643 = vmatprep.subr.mxu0 0.0
  %v644 = vand.u32 %v195, 4294901760
  %645 = vmatpush1.msra.mxu0 %v644
  %646 = vmatprep.subr.mxu0 0.0
  %v647 = vand.u32 %v194, 4294901760
  %648 = vmatpush1.msra.mxu0 %v647
  %649 = vmatprep.subr.mxu0 0.0
  %650 = vmatpush2.msra.mxu0 0.0
  %651 = vmatprep.subr.mxu0 0.0
  %652 = vmatpush2.msra.mxu0 0.0
  %653 = vmatprep.subr.mxu0 0.0
  %654 = vmatpush2.msra.mxu0 0.0
  %655 = vmatprep.subr.mxu0 0.0
  %656 = vmatpush2.msra.mxu0 0.0
  %657 = vmatprep.subr.mxu0 0.0
  %658 = vmatpush2.msra.mxu0 0.0
  %659 = vmatprep.subr.mxu0 0.0
  %660 = vmatpush2.msra.mxu0 0.0
  %661 = vmatprep.subr.mxu0 0.0
  %662 = vmatpush2.msra.mxu0 0.0
  %663 = vmatprep.subr.mxu0 0.0
  %664 = vmatpush2.msra.mxu0 0.0
  %665 = vmatprep.subr.mxu0 0.0
  %666 = vmatpush2.msra.mxu0 0.0
  %667 = vmatprep.subr.mxu0 0.0
  %668 = vmatpush2.msra.mxu0 0.0
  %669 = vmatprep.subr.mxu0 0.0
  %670 = vmatpush2.msra.mxu0 0.0
  %671 = vmatprep.subr.mxu0 0.0
  %672 = vmatpush2.msra.mxu0 0.0
  %673 = vmatprep.subr.mxu0 0.0
  %674 = vmatpush2.msra.mxu0 0.0
  %675 = vmatprep.subr.mxu0 0.0
  %676 = vmatpush2.msra.mxu0 0.0
  %677 = vmatprep.subr.mxu0 0.0
  %678 = vmatpush2.msra.mxu0 0.0
  %679 = vmatprep.subr.mxu0 0.0
  %680 = vmatpush2.msra.mxu0 0.0
  %681 = vmatprep.mubr.f32.mxu0 0.0
  %v682 = vand.u32 %v201, 4294901760
  %683 = vmatmul.mubr.f32.gmra.mxu0 %v682
  %v684 = vpop.f32.mrf.mxu0
  %v685 = vadd.f32 %v610, %v684
  %v686 = vpop.f32.mrf.mxu0
  %687 = vdwg.mxu0
  %v688 = vmax.f32 %v685, 0.0
  %vm689 = vcmask 31744
  %v691 = vsel %vm689, %v688, 0
  %vm693 = vcmask 1043456
  %v695 = vsel %vm693, %v198, 0
  %697 = vmatprep.subr.mxu0 0.0
  %698 = vmatpush1.msra.mxu0 0.0
  %699 = vmatprep.subr.mxu0 0.0
  %700 = vmatpush1.msra.mxu0 0.0
  %701 = vmatprep.subr.mxu0 0.0
  %702 = vmatpush1.msra.mxu0 0.0
  %703 = vmatprep.subr.mxu0 0.0
  %704 = vmatpush1.msra.mxu0 0.0
  %705 = vmatprep.subr.mxu0 0.0
  %706 = vmatpush1.msra.mxu0 0.0
  %707 = vmatprep.subr.mxu0 0.0
  %708 = vmatpush1.msra.mxu0 0.0
  %709 = vmatprep.subr.mxu0 0.0
  %710 = vmatpush1.msra.mxu0 0.0
  %711 = vmatprep.subr.mxu0 0.0
  %712 = vmatpush1.msra.mxu0 0.0
  %713 = vmatprep.subr.mxu0 0.0
  %714 = vmatpush1.msra.mxu0 0.0
  %715 = vmatprep.subr.mxu0 0.0
  %716 = vmatpush1.msra.mxu0 0.0
  %717 = vmatprep.subr.mxu0 0.0
  %718 = vmatpush1.msra.mxu0 0.0
  %719 = vmatprep.subr.mxu0 0.0
  %720 = vmatpush1.msra.mxu0 0.0
  %721 = vmatprep.subr.mxu0 0.0
  %722 = vmatpush1.msra.mxu0 0.0
  %723 = vmatprep.subr.mxu0 0.0
  %724 = vmatpush1.msra.mxu0 0.0
  %725 = vmatprep.subr.mxu0 0.0
  %726 = vmatpush1.msra.mxu0 0.0
  %727 = vmatprep.subr.mxu0 0.0
  %v728 = vand.u32 %v695, 4294901760
  %729 = vmatpush1.msra.mxu0 %v728
  %730 = vmatprep.subr.mxu0 0.0
  %731 = vmatpush2.msra.mxu0 0.0
  %732 = vmatprep.subr.mxu0 0.0
  %733 = vmatpush2.msra.mxu0 0.0
  %734 = vmatprep.subr.mxu0 0.0
  %735 = vmatpush2.msra.mxu0 0.0
  %736 = vmatprep.subr.mxu0 0.0
  %737 = vmatpush2.msra.mxu0 0.0
  %738 = vmatprep.subr.mxu0 0.0
  %739 = vmatpush2.msra.mxu0 0.0
  %740 = vmatprep.subr.mxu0 0.0
  %741 = vmatpush2.msra.mxu0 0.0
  %742 = vmatprep.subr.mxu0 0.0
  %743 = vmatpush2.msra.mxu0 0.0
  %744 = vmatprep.subr.mxu0 0.0
  %745 = vmatpush2.msra.mxu0 0.0
  %746 = vmatprep.subr.mxu0 0.0
  %747 = vmatpush2.msra.mxu0 0.0
  %748 = vmatprep.subr.mxu0 0.0
  %749 = vmatpush2.msra.mxu0 0.0
  %750 = vmatprep.subr.mxu0 0.0
  %751 = vmatpush2.msra.mxu0 0.0
  %752 = vmatprep.subr.mxu0 0.0
  %753 = vmatpush2.msra.mxu0 0.0
  %754 = vmatprep.subr.mxu0 0.0
  %755 = vmatpush2.msra.mxu0 0.0
  %756 = vmatprep.subr.mxu0 0.0
  %757 = vmatpush2.msra.mxu0 0.0
  %758 = vmatprep.subr.mxu0 0.0
  %759 = vmatpush2.msra.mxu0 0.0
  %760 = vmatprep.subr.mxu0 0.0
  %761 = vmatpush2.msra.mxu0 0.0
  %762 = vmatprep.mubr.f32.mxu0 0.0
  %v763 = vand.u32 %v691, 4294901760
  %v764 = vsub.f32 %v691, %v763
  %v765 = vand.u32 %v764, 4294901760
  %v766 = vsub.f32 %v764, %v765
  %v767 = vand.u32 %v766, 4294901760
  %768 = vmatmul.mubr.f32.gmra.mxu0 %v767
  %v769 = vpop.f32.mrf.mxu0
  %v770 = vadd.f32 0.0, %v769
  %v771 = vpop.f32.mrf.mxu0
  %772 = vdwg.mxu0
  %773 = vmatprep.subr.mxu0 0.0
  %774 = vmatpush1.msra.mxu0 0.0
  %775 = vmatprep.subr.mxu0 0.0
  %776 = vmatpush1.msra.mxu0 0.0
  %777 = vmatprep.subr.mxu0 0.0
  %778 = vmatpush1.msra.mxu0 0.0
  %779 = vmatprep.subr.mxu0 0.0
  %780 = vmatpush1.msra.mxu0 0.0
  %781 = vmatprep.subr.mxu0 0.0
  %782 = vmatpush1.msra.mxu0 0.0
  %783 = vmatprep.subr.mxu0 0.0
  %784 = vmatpush1.msra.mxu0 0.0
  %785 = vmatprep.subr.mxu0 0.0
  %786 = vmatpush1.msra.mxu0 0.0
  %787 = vmatprep.subr.mxu0 0.0
  %788 = vmatpush1.msra.mxu0 0.0
  %789 = vmatprep.subr.mxu0 0.0
  %790 = vmatpush1.msra.mxu0 0.0
  %791 = vmatprep.subr.mxu0 0.0
  %792 = vmatpush1.msra.mxu0 0.0
  %793 = vmatprep.subr.mxu0 0.0
  %794 = vmatpush1.msra.mxu0 0.0
  %795 = vmatprep.subr.mxu0 0.0
  %796 = vmatpush1.msra.mxu0 0.0
  %797 = vmatprep.subr.mxu0 0.0
  %798 = vmatpush1.msra.mxu0 0.0
  %799 = vmatprep.subr.mxu0 0.0
  %800 = vmatpush1.msra.mxu0 0.0
  %801 = vmatprep.subr.mxu0 0.0
  %802 = vmatpush1.msra.mxu0 0.0
  %803 = vmatprep.subr.mxu0 0.0
  %v804 = vand.u32 %v695, 4294901760
  %v805 = vsub.f32 %v695, %v804
  %v806 = vand.u32 %v805, 4294901760
  %v807 = vsub.f32 %v805, %v806
  %v808 = vand.u32 %v807, 4294901760
  %809 = vmatpush1.msra.mxu0 %v808
  %810 = vmatprep.subr.mxu0 0.0
  %811 = vmatpush2.msra.mxu0 0.0
  %812 = vmatprep.subr.mxu0 0.0
  %813 = vmatpush2.msra.mxu0 0.0
  %814 = vmatprep.subr.mxu0 0.0
  %815 = vmatpush2.msra.mxu0 0.0
  %816 = vmatprep.subr.mxu0 0.0
  %817 = vmatpush2.msra.mxu0 0.0
  %818 = vmatprep.subr.mxu0 0.0
  %819 = vmatpush2.msra.mxu0 0.0
  %820 = vmatprep.subr.mxu0 0.0
  %821 = vmatpush2.msra.mxu0 0.0
  %822 = vmatprep.subr.mxu0 0.0
  %823 = vmatpush2.msra.mxu0 0.0
  %824 = vmatprep.subr.mxu0 0.0
  %825 = vmatpush2.msra.mxu0 0.0
  %826 = vmatprep.subr.mxu0 0.0
  %827 = vmatpush2.msra.mxu0 0.0
  %828 = vmatprep.subr.mxu0 0.0
  %829 = vmatpush2.msra.mxu0 0.0
  %830 = vmatprep.subr.mxu0 0.0
  %831 = vmatpush2.msra.mxu0 0.0
  %832 = vmatprep.subr.mxu0 0.0
  %833 = vmatpush2.msra.mxu0 0.0
  %834 = vmatprep.subr.mxu0 0.0
  %835 = vmatpush2.msra.mxu0 0.0
  %836 = vmatprep.subr.mxu0 0.0
  %837 = vmatpush2.msra.mxu0 0.0
  %838 = vmatprep.subr.mxu0 0.0
  %839 = vmatpush2.msra.mxu0 0.0
  %840 = vmatprep.subr.mxu0 0.0
  %841 = vmatpush2.msra.mxu0 0.0
  %842 = vmatprep.mubr.f32.mxu0 0.0
  %v843 = vand.u32 %v691, 4294901760
  %844 = vmatmul.mubr.f32.gmra.mxu0 %v843
  %v845 = vpop.f32.mrf.mxu0
  %v846 = vadd.f32 %v770, %v845
  %v847 = vpop.f32.mrf.mxu0
  %848 = vdwg.mxu0
  %849 = vmatprep.subr.mxu0 0.0
  %850 = vmatpush1.msra.mxu0 0.0
  %851 = vmatprep.subr.mxu0 0.0
  %852 = vmatpush1.msra.mxu0 0.0
  %853 = vmatprep.subr.mxu0 0.0
  %854 = vmatpush1.msra.mxu0 0.0
  %855 = vmatprep.subr.mxu0 0.0
  %856 = vmatpush1.msra.mxu0 0.0
  %857 = vmatprep.subr.mxu0 0.0
  %858 = vmatpush1.msra.mxu0 0.0
  %859 = vmatprep.subr.mxu0 0.0
  %860 = vmatpush1.msra.mxu0 0.0
  %861 = vmatprep.subr.mxu0 0.0
  %862 = vmatpush1.msra.mxu0 0.0
  %863 = vmatprep.subr.mxu0 0.0
  %864 = vmatpush1.msra.mxu0 0.0
  %865 = vmatprep.subr.mxu0 0.0
  %866 = vmatpush1.msra.mxu0 0.0
  %867 = vmatprep.subr.mxu0 0.0
  %868 = vmatpush1.msra.mxu0 0.0
  %869 = vmatprep.subr.mxu0 0.0
  %870 = vmatpush1.msra.mxu0 0.0
  %871 = vmatprep.subr.mxu0 0.0
  %872 = vmatpush1.msra.mxu0 0.0
  %873 = vmatprep.subr.mxu0 0.0
  %874 = vmatpush1.msra.mxu0 0.0
  %875 = vmatprep.subr.mxu0 0.0
  %876 = vmatpush1.msra.mxu0 0.0
  %877 = vmatprep.subr.mxu0 0.0
  %878 = vmatpush1.msra.mxu0 0.0
  %879 = vmatprep.subr.mxu0 0.0
  %v880 = vand.u32 %v695, 4294901760
  %v881 = vsub.f32 %v695, %v880
  %882 = vmatpush1.msra.mxu0 %v881
  %883 = vmatprep.subr.mxu0 0.0
  %884 = vmatpush2.msra.mxu0 0.0
  %885 = vmatprep.subr.mxu0 0.0
  %886 = vmatpush2.msra.mxu0 0.0
  %887 = vmatprep.subr.mxu0 0.0
  %888 = vmatpush2.msra.mxu0 0.0
  %889 = vmatprep.subr.mxu0 0.0
  %890 = vmatpush2.msra.mxu0 0.0
  %891 = vmatprep.subr.mxu0 0.0
  %892 = vmatpush2.msra.mxu0 0.0
  %893 = vmatprep.subr.mxu0 0.0
  %894 = vmatpush2.msra.mxu0 0.0
  %895 = vmatprep.subr.mxu0 0.0
  %896 = vmatpush2.msra.mxu0 0.0
  %897 = vmatprep.subr.mxu0 0.0
  %898 = vmatpush2.msra.mxu0 0.0
  %899 = vmatprep.subr.mxu0 0.0
  %900 = vmatpush2.msra.mxu0 0.0
  %901 = vmatprep.subr.mxu0 0.0
  %902 = vmatpush2.msra.mxu0 0.0
  %903 = vmatprep.subr.mxu0 0.0
  %904 = vmatpush2.msra.mxu0 0.0
  %905 = vmatprep.subr.mxu0 0.0
  %906 = vmatpush2.msra.mxu0 0.0
  %907 = vmatprep.subr.mxu0 0.0
  %908 = vmatpush2.msra.mxu0 0.0
  %909 = vmatprep.subr.mxu0 0.0
  %910 = vmatpush2.msra.mxu0 0.0
  %911 = vmatprep.subr.mxu0 0.0
  %912 = vmatpush2.msra.mxu0 0.0
  %913 = vmatprep.subr.mxu0 0.0
  %914 = vmatpush2.msra.mxu0 0.0
  %915 = vmatprep.mubr.f32.mxu0 0.0
  %v916 = vand.u32 %v691, 4294901760
  %v917 = vsub.f32 %v691, %v916
  %918 = vmatmul.mubr.f32.gmra.mxu0 %v917
  %v919 = vpop.f32.mrf.mxu0
  %v920 = vadd.f32 %v846, %v919
  %v921 = vpop.f32.mrf.mxu0
  %922 = vdwg.mxu0
  %923 = vmatprep.subr.mxu0 0.0
  %924 = vmatpush1.msra.mxu0 0.0
  %925 = vmatprep.subr.mxu0 0.0
  %926 = vmatpush1.msra.mxu0 0.0
  %927 = vmatprep.subr.mxu0 0.0
  %928 = vmatpush1.msra.mxu0 0.0
  %929 = vmatprep.subr.mxu0 0.0
  %930 = vmatpush1.msra.mxu0 0.0
  %931 = vmatprep.subr.mxu0 0.0
  %932 = vmatpush1.msra.mxu0 0.0
  %933 = vmatprep.subr.mxu0 0.0
  %934 = vmatpush1.msra.mxu0 0.0
  %935 = vmatprep.subr.mxu0 0.0
  %936 = vmatpush1.msra.mxu0 0.0
  %937 = vmatprep.subr.mxu0 0.0
  %938 = vmatpush1.msra.mxu0 0.0
  %939 = vmatprep.subr.mxu0 0.0
  %940 = vmatpush1.msra.mxu0 0.0
  %941 = vmatprep.subr.mxu0 0.0
  %942 = vmatpush1.msra.mxu0 0.0
  %943 = vmatprep.subr.mxu0 0.0
  %944 = vmatpush1.msra.mxu0 0.0
  %945 = vmatprep.subr.mxu0 0.0
  %946 = vmatpush1.msra.mxu0 0.0
  %947 = vmatprep.subr.mxu0 0.0
  %948 = vmatpush1.msra.mxu0 0.0
  %949 = vmatprep.subr.mxu0 0.0
  %950 = vmatpush1.msra.mxu0 0.0
  %951 = vmatprep.subr.mxu0 0.0
  %952 = vmatpush1.msra.mxu0 0.0
  %953 = vmatprep.subr.mxu0 0.0
  %v954 = vand.u32 %v695, 4294901760
  %955 = vmatpush1.msra.mxu0 %v954
  %956 = vmatprep.subr.mxu0 0.0
  %957 = vmatpush2.msra.mxu0 0.0
  %958 = vmatprep.subr.mxu0 0.0
  %959 = vmatpush2.msra.mxu0 0.0
  %960 = vmatprep.subr.mxu0 0.0
  %961 = vmatpush2.msra.mxu0 0.0
  %962 = vmatprep.subr.mxu0 0.0
  %963 = vmatpush2.msra.mxu0 0.0
  %964 = vmatprep.subr.mxu0 0.0
  %965 = vmatpush2.msra.mxu0 0.0
  %966 = vmatprep.subr.mxu0 0.0
  %967 = vmatpush2.msra.mxu0 0.0
  %968 = vmatprep.subr.mxu0 0.0
  %969 = vmatpush2.msra.mxu0 0.0
  %970 = vmatprep.subr.mxu0 0.0
  %971 = vmatpush2.msra.mxu0 0.0
  %972 = vmatprep.subr.mxu0 0.0
  %973 = vmatpush2.msra.mxu0 0.0
  %974 = vmatprep.subr.mxu0 0.0
  %975 = vmatpush2.msra.mxu0 0.0
  %976 = vmatprep.subr.mxu0 0.0
  %977 = vmatpush2.msra.mxu0 0.0
  %978 = vmatprep.subr.mxu0 0.0
  %979 = vmatpush2.msra.mxu0 0.0
  %980 = vmatprep.subr.mxu0 0.0
  %981 = vmatpush2.msra.mxu0 0.0
  %982 = vmatprep.subr.mxu0 0.0
  %983 = vmatpush2.msra.mxu0 0.0
  %984 = vmatprep.subr.mxu0 0.0
  %985 = vmatpush2.msra.mxu0 0.0
  %986 = vmatprep.subr.mxu0 0.0
  %987 = vmatpush2.msra.mxu0 0.0
  %988 = vmatprep.mubr.f32.mxu0 0.0
  %v989 = vand.u32 %v691, 4294901760
  %v990 = vsub.f32 %v691, %v989
  %v991 = vand.u32 %v990, 4294901760
  %992 = vmatmul.mubr.f32.gmra.mxu0 %v991
  %v993 = vpop.f32.mrf.mxu0
  %v994 = vadd.f32 %v920, %v993
  %v995 = vpop.f32.mrf.mxu0
  %996 = vdwg.mxu0
  %997 = vmatprep.subr.mxu0 0.0
  %998 = vmatpush1.msra.mxu0 0.0
  %999 = vmatprep.subr.mxu0 0.0
  %1000 = vmatpush1.msra.mxu0 0.0
  %1001 = vmatprep.subr.mxu0 0.0
  %1002 = vmatpush1.msra.mxu0 0.0
  %1003 = vmatprep.subr.mxu0 0.0
  %1004 = vmatpush1.msra.mxu0 0.0
  %1005 = vmatprep.subr.mxu0 0.0
  %1006 = vmatpush1.msra.mxu0 0.0
  %1007 = vmatprep.subr.mxu0 0.0
  %1008 = vmatpush1.msra.mxu0 0.0
  %1009 = vmatprep.subr.mxu0 0.0
  %1010 = vmatpush1.msra.mxu0 0.0
  %1011 = vmatprep.subr.mxu0 0.0
  %1012 = vmatpush1.msra.mxu0 0.0
  %1013 = vmatprep.subr.mxu0 0.0
  %1014 = vmatpush1.msra.mxu0 0.0
  %1015 = vmatprep.subr.mxu0 0.0
  %1016 = vmatpush1.msra.mxu0 0.0
  %1017 = vmatprep.subr.mxu0 0.0
  %1018 = vmatpush1.msra.mxu0 0.0
  %1019 = vmatprep.subr.mxu0 0.0
  %1020 = vmatpush1.msra.mxu0 0.0
  %1021 = vmatprep.subr.mxu0 0.0
  %1022 = vmatpush1.msra.mxu0 0.0
  %1023 = vmatprep.subr.mxu0 0.0
  %1024 = vmatpush1.msra.mxu0 0.0
  %1025 = vmatprep.subr.mxu0 0.0
  %1026 = vmatpush1.msra.mxu0 0.0
  %1027 = vmatprep.subr.mxu0 0.0
  %v1028 = vand.u32 %v695, 4294901760
  %v1029 = vsub.f32 %v695, %v1028
  %v1030 = vand.u32 %v1029, 4294901760
  %1031 = vmatpush1.msra.mxu0 %v1030
  %1032 = vmatprep.subr.mxu0 0.0
  %1033 = vmatpush2.msra.mxu0 0.0
  %1034 = vmatprep.subr.mxu0 0.0
  %1035 = vmatpush2.msra.mxu0 0.0
  %1036 = vmatprep.subr.mxu0 0.0
  %1037 = vmatpush2.msra.mxu0 0.0
  %1038 = vmatprep.subr.mxu0 0.0
  %1039 = vmatpush2.msra.mxu0 0.0
  %1040 = vmatprep.subr.mxu0 0.0
  %1041 = vmatpush2.msra.mxu0 0.0
  %1042 = vmatprep.subr.mxu0 0.0
  %1043 = vmatpush2.msra.mxu0 0.0
  %1044 = vmatprep.subr.mxu0 0.0
  %1045 = vmatpush2.msra.mxu0 0.0
  %1046 = vmatprep.subr.mxu0 0.0
  %1047 = vmatpush2.msra.mxu0 0.0
  %1048 = vmatprep.subr.mxu0 0.0
  %1049 = vmatpush2.msra.mxu0 0.0
  %1050 = vmatprep.subr.mxu0 0.0
  %1051 = vmatpush2.msra.mxu0 0.0
  %1052 = vmatprep.subr.mxu0 0.0
  %1053 = vmatpush2.msra.mxu0 0.0
  %1054 = vmatprep.subr.mxu0 0.0
  %1055 = vmatpush2.msra.mxu0 0.0
  %1056 = vmatprep.subr.mxu0 0.0
  %1057 = vmatpush2.msra.mxu0 0.0
  %1058 = vmatprep.subr.mxu0 0.0
  %1059 = vmatpush2.msra.mxu0 0.0
  %1060 = vmatprep.subr.mxu0 0.0
  %1061 = vmatpush2.msra.mxu0 0.0
  %1062 = vmatprep.subr.mxu0 0.0
  %1063 = vmatpush2.msra.mxu0 0.0
  %1064 = vmatprep.mubr.f32.mxu0 0.0
  %v1065 = vand.u32 %v691, 4294901760
  %1066 = vmatmul.mubr.f32.gmra.mxu0 %v1065
  %v1067 = vpop.f32.mrf.mxu0
  %v1068 = vadd.f32 %v994, %v1067
  %v1069 = vpop.f32.mrf.mxu0
  %1070 = vdwg.mxu0
  %1071 = vmatprep.subr.mxu0 0.0
  %1072 = vmatpush1.msra.mxu0 0.0
  %1073 = vmatprep.subr.mxu0 0.0
  %1074 = vmatpush1.msra.mxu0 0.0
  %1075 = vmatprep.subr.mxu0 0.0
  %1076 = vmatpush1.msra.mxu0 0.0
  %1077 = vmatprep.subr.mxu0 0.0
  %1078 = vmatpush1.msra.mxu0 0.0
  %1079 = vmatprep.subr.mxu0 0.0
  %1080 = vmatpush1.msra.mxu0 0.0
  %1081 = vmatprep.subr.mxu0 0.0
  %1082 = vmatpush1.msra.mxu0 0.0
  %1083 = vmatprep.subr.mxu0 0.0
  %1084 = vmatpush1.msra.mxu0 0.0
  %1085 = vmatprep.subr.mxu0 0.0
  %1086 = vmatpush1.msra.mxu0 0.0
  %1087 = vmatprep.subr.mxu0 0.0
  %1088 = vmatpush1.msra.mxu0 0.0
  %1089 = vmatprep.subr.mxu0 0.0
  %1090 = vmatpush1.msra.mxu0 0.0
  %1091 = vmatprep.subr.mxu0 0.0
  %1092 = vmatpush1.msra.mxu0 0.0
  %1093 = vmatprep.subr.mxu0 0.0
  %1094 = vmatpush1.msra.mxu0 0.0
  %1095 = vmatprep.subr.mxu0 0.0
  %1096 = vmatpush1.msra.mxu0 0.0
  %1097 = vmatprep.subr.mxu0 0.0
  %1098 = vmatpush1.msra.mxu0 0.0
  %1099 = vmatprep.subr.mxu0 0.0
  %1100 = vmatpush1.msra.mxu0 0.0
  %1101 = vmatprep.subr.mxu0 0.0
  %v1102 = vand.u32 %v695, 4294901760
  %1103 = vmatpush1.msra.mxu0 %v1102
  %1104 = vmatprep.subr.mxu0 0.0
  %1105 = vmatpush2.msra.mxu0 0.0
  %1106 = vmatprep.subr.mxu0 0.0
  %1107 = vmatpush2.msra.mxu0 0.0
  %1108 = vmatprep.subr.mxu0 0.0
  %1109 = vmatpush2.msra.mxu0 0.0
  %1110 = vmatprep.subr.mxu0 0.0
  %1111 = vmatpush2.msra.mxu0 0.0
  %1112 = vmatprep.subr.mxu0 0.0
  %1113 = vmatpush2.msra.mxu0 0.0
  %1114 = vmatprep.subr.mxu0 0.0
  %1115 = vmatpush2.msra.mxu0 0.0
  %1116 = vmatprep.subr.mxu0 0.0
  %1117 = vmatpush2.msra.mxu0 0.0
  %1118 = vmatprep.subr.mxu0 0.0
  %1119 = vmatpush2.msra.mxu0 0.0
  %1120 = vmatprep.subr.mxu0 0.0
  %1121 = vmatpush2.msra.mxu0 0.0
  %1122 = vmatprep.subr.mxu0 0.0
  %1123 = vmatpush2.msra.mxu0 0.0
  %1124 = vmatprep.subr.mxu0 0.0
  %1125 = vmatpush2.msra.mxu0 0.0
  %1126 = vmatprep.subr.mxu0 0.0
  %1127 = vmatpush2.msra.mxu0 0.0
  %1128 = vmatprep.subr.mxu0 0.0
  %1129 = vmatpush2.msra.mxu0 0.0
  %1130 = vmatprep.subr.mxu0 0.0
  %1131 = vmatpush2.msra.mxu0 0.0
  %1132 = vmatprep.subr.mxu0 0.0
  %1133 = vmatpush2.msra.mxu0 0.0
  %1134 = vmatprep.subr.mxu0 0.0
  %1135 = vmatpush2.msra.mxu0 0.0
  %1136 = vmatprep.mubr.f32.mxu0 0.0
  %v1137 = vand.u32 %v691, 4294901760
  %1138 = vmatmul.mubr.f32.gmra.mxu0 %v1137
  %v1139 = vpop.f32.mrf.mxu0
  %v1140 = vadd.f32 %v1068, %v1139
  %v1141 = vpop.f32.mrf.mxu0
  %1142 = vdwg.mxu0
  %v1144 = vrot.slane %v1140, 2
  %v1146 = vadd.f32 %v1140, %v1144
  %v1147 = vxor.u32 %v1146, 2147483648
  %v1148 = vmul.f32 %v1147, 1.442695
  %v1149 = vpow.pop %v1148
  %v1150 = vadd.f32 %v1149, 1.0
  %v1151 = vrcp.pop %v1150
  %v1152 = vmul.f32 1.0, %v1151
  %v1153 = vlaneseq
  %v1154 = vshrl.u32 %v1153, 7
  %v1155 = vsub.s32 0, %v1154
  %v1156 = vrot.slane %v1152, %v1155
  %1158 = vbcast.lane.b32.xlu0 %v1156, 256
  %v1159 = vpop.permute.xlu0 %1158
  %s1161 = sor.u32 256, 8
  %1162 = vbcast.lane.b32.xlu0 %v1156, %s1161
  %v1163 = vpop.permute.xlu0 %1162
  %s1165 = sor.u32 256, 16
  %1166 = vbcast.lane.b32.xlu0 %v1156, %s1165
  %v1167 = vpop.permute.xlu0 %1166
  %s1169 = sor.u32 256, 24
  %1170 = vbcast.lane.b32.xlu0 %v1156, %s1169
  %v1171 = vpop.permute.xlu0 %1170
  %v1172 = vlaneseq
  %v1173 = vshrl.u32 %v1172, 7
  %v1174 = vsub.s32 1, %v1173
  %v1175 = vrot.slane %v1152, %v1174
  %1177 = vbcast.lane.b32.xlu0 %v1175, 256
  %v1178 = vpop.permute.xlu0 %1177
  %s1180 = sor.u32 256, 8
  %1181 = vbcast.lane.b32.xlu0 %v1175, %s1180
  %v1182 = vpop.permute.xlu0 %1181
  %s1184 = sor.u32 256, 16
  %1185 = vbcast.lane.b32.xlu0 %v1175, %s1184
  %v1186 = vpop.permute.xlu0 %1185
  %s1188 = sor.u32 256, 24
  %1189 = vbcast.lane.b32.xlu0 %v1175, %s1188
  %v1190 = vpop.permute.xlu0 %1189
  %v1191 = vmul.f32 %v14, %v1159
  %v1192 = vmul.f32 %v15, %v1159
  %v1193 = vmul.f32 %v16, %v1163
  %v1194 = vmul.f32 %v17, %v1163
  %v1195 = vmul.f32 %v18, %v1167
  %v1196 = vmul.f32 %v19, %v1167
  %v1197 = vmul.f32 %v20, %v1171
  %v1198 = vmul.f32 %v21, %v1171
  %v1199 = vmul.f32 %v22, %v1178
  %v1200 = vmul.f32 %v23, %v1178
  %v1201 = vmul.f32 %v24, %v1182
  %v1202 = vmul.f32 %v25, %v1182
  %v1203 = vmul.f32 %v26, %v1186
  %v1204 = vmul.f32 %v27, %v1186
  %v1205 = vmul.f32 %v28, %v1190
  %v1206 = vmul.f32 %v29, %v1190
  %1207 = vst [vmem:[%s3] sm:$0xff] %v1191
  %1208 = vst [vmem:[%s3 + $0x8] sm:$0xff] %v1192
  %1209 = vst [vmem:[%s3 + $0x10] sm:$0xff] %v1193
  %1210 = vst [vmem:[%s3 + $0x18] sm:$0xff] %v1194
  %1211 = vst [vmem:[%s3 + $0x20] sm:$0xff] %v1195
  %1212 = vst [vmem:[%s3 + $0x28] sm:$0xff] %v1196
  %1213 = vst [vmem:[%s3 + $0x30] sm:$0xff] %v1197
  %1214 = vst [vmem:[%s3 + $0x38] sm:$0xff] %v1198
  %1215 = vst [vmem:[%s3 + $0x40] sm:$0xff] %v1199
  %1216 = vst [vmem:[%s3 + $0x48] sm:$0xff] %v1200
  %1217 = vst [vmem:[%s3 + $0x50] sm:$0xff] %v1201
  %1218 = vst [vmem:[%s3 + $0x58] sm:$0xff] %v1202
  %1219 = vst [vmem:[%s3 + $0x60] sm:$0xff] %v1203
  %1220 = vst [vmem:[%s3 + $0x68] sm:$0xff] %v1204
  %1221 = vst [vmem:[%s3 + $0x70] sm:$0xff] %v1205
  %1222 = vst [vmem:[%s3 + $0x78] sm:$0xff] %v1206
  // Predicated region
  $region14: #{channel_attention.1} parent=0 // pred_check
    _
  $region15: #{channel_attention.1} parent=0 // pred_check_branch
    %1224 = sbr.rel (0) target = $region17
  $region16: #{channel_attention.1} parent=0 // pred_region
    _
  $region17: #{channel_attention.1} parent=0 // pred_fallthru
    _
  // Predicated region
  $region18: #{channel_attention.1} parent=0 // pred_check
    _
  $region19: #{channel_attention.1} parent=0 // pred_check_branch
    %1226 = sbr.rel (0) target = $region21
  $region20: #{channel_attention.1} parent=0 // pred_region
    _
  $region21: #{channel_attention.1} parent=0 // pred_fallthru
    _

</llo_original>
